<compile_context>
chip_gen: v5e
topology: v5e:2x2
jax: 0.10.0
libtpu: 0.0.40
codegen_flags: <defaults>
</compile_context>

<pallas_src>
import jax
import jax.numpy as jnp
from jax.experimental import pallas as pl
from jax.experimental.pallas import tpu as pltpu

CONTEXT_SIZE = 2
N_DIM = 100       # embedding dim (matches the PyTorch module default)
HIDDEN = 128      # linear1 output size, fixed by the module
TILE_B = 64       # batch tile: 2 parallel grid steps at B_pad = 128 (v7x megacore)


def _round_up(x, m):
    return (x + m - 1) // m * m


def ngram_kernel(ids_ref, m_cat_ref, w2_ref, b2_ref, out_ref):
    # ids_ref:   (TILE_B, C)   int32  context word ids for this batch tile
    # m_cat_ref: (C*VP, H)     f32    folded embedding@W1 tables, b1 folded into block 0
    # w2_ref:    (H, VP)       f32    linear2 weight, pre-transposed, vocab-padded
    # b2_ref:    (1, VP)       f32    padded columns hold -1e30
    # out_ref:   (TILE_B, VP)  f32    log-probabilities (lane-dense)
    tb, vp = out_ref.shape
    kdim = m_cat_ref.shape[0]                                   # C * VP

    # Combined one-hot over all context positions: row b is hot at lane
    # id_{b,c} + c*VP for every c, so embedding gather + linear1 + bias
    # collapse into a single K = C*VP = 256 MXU matmul.
    lane = jax.lax.broadcasted_iota(jnp.int32, (tb, kdim), 1)
    sel = lane == ids_ref[:, 0:1]
    for c in range(1, CONTEXT_SIZE):
        sel = sel | (lane == ids_ref[:, c:c + 1] + c * vp)
    onehot = sel.astype(jnp.float32)                            # (tb, C*VP)

    h = jnp.dot(onehot, m_cat_ref[...],
                preferred_element_type=jnp.float32)             # (tb, H), b1 included
    h = jnp.maximum(h, jnp.float32(0.0))                        # relu

    logits = jnp.dot(h, w2_ref[...],
                     preferred_element_type=jnp.float32) + b2_ref[...]  # (tb, VP)

    # Numerically stable log_softmax; padded lanes sit at ~-1e30 so they
    # contribute exp(...) == 0 and never win the max.
    m = jnp.max(logits, axis=-1, keepdims=True)
    shifted = logits - m
    lse = jnp.log(jnp.sum(jnp.exp(shifted), axis=-1, keepdims=True))
    out_ref[...] = shifted - lse


def ngram_forward(ids_pad, m_cat, w2_p, b2_p):
    b_pad, c = ids_pad.shape
    kdim, h = m_cat.shape
    vp = w2_p.shape[1]
    grid = (b_pad // TILE_B,)

    flops = 2 * b_pad * (kdim * h + h * vp)
    transcendentals = b_pad * (vp + 1)
    bytes_accessed = 4 * (ids_pad.size + m_cat.size + w2_p.size + b2_p.size
                          + b_pad * vp)

    return pl.pallas_call(
        ngram_kernel,
        out_shape=jax.ShapeDtypeStruct((b_pad, vp), jnp.float32),
        grid=grid,
        in_specs=[
            pl.BlockSpec((TILE_B, c), lambda i: (i, 0)),   # ids: tiled over batch
            pl.BlockSpec((kdim, h), lambda i: (0, 0)),     # folded emb+linear1 tables
            pl.BlockSpec((h, vp), lambda i: (0, 0)),       # w2 (vocab-padded)
            pl.BlockSpec((1, vp), lambda i: (0, 0)),       # b2 (vocab-padded)
        ],
        out_specs=pl.BlockSpec((TILE_B, vp), lambda i: (i, 0)),
        compiler_params=pltpu.CompilerParams(
            dimension_semantics=("parallel",)),
        cost_estimate=pl.CostEstimate(
            flops=flops,
            transcendentals=transcendentals,
            bytes_accessed=bytes_accessed),
    )(ids_pad, m_cat, w2_p, b2_p)


def reference_forward(ids, table, w1, b1, w2, b2):
    # Pure-JAX reference on the *unpadded*, *unfolded* parameters.
    emb = table[ids]                                   # (B, C, D)
    x = emb.reshape(ids.shape[0], -1)                  # (B, C*D)
    hid = jnp.maximum(x @ w1 + b1, 0.0)                # (B, H)
    logits = hid @ w2 + b2                             # (B, V)
    return jax.nn.log_softmax(logits, axis=-1)


if __name__ == "__main__":
    # Build vocab exactly as the original script does (deterministic ordering).
    test_sentence = (
        "When forty winters shall besiege thy brow,And dig deep trenches in "
        "thy beauty's field,Thy youth's proud livery so gazed on now,Will be "
        "a totter'd weed of small worth held:Then being asked, where all thy "
        "beauty lies,Where all the treasure of thy lusty days;To say, within "
        "thine own deep sunken eyes,Were an all-eating shame, and thriftless "
        "praise.How much more praise deserv'd thy beauty's use,If thou "
        "couldst answer 'This fair child of mineShall sum my count, and make "
        "my old excuse,'Proving his beauty by succession thine!This were to "
        "be new made when thou art old,And see thy blood warm when thou "
        "feel'st it cold."
    ).split()
    vocb = sorted(set(test_sentence))
    word2id = {w: i for i, w in enumerate(vocb)}
    V = len(word2id)
    VP = _round_up(V, 128)       # lane-dense vocab axis

    # All n-gram contexts of the sentence (classic trigram setup), batched.
    n_ctx = len(test_sentence) - CONTEXT_SIZE
    ids = jnp.array(
        [[word2id[test_sentence[i + c]] for c in range(CONTEXT_SIZE)]
         for i in range(n_ctx)],
        dtype=jnp.int32)                               # (B, C)
    B = ids.shape[0]
    B_pad = _round_up(B, TILE_B)
    ids_pad = jnp.pad(ids, ((0, B_pad - B), (0, 0)))   # pad rows with id 0

    # Deterministic parameter init (synthetic, not a checkpoint load).
    key = jax.random.PRNGKey(0)
    k_emb, k_w1, k_b1, k_w2, k_b2 = jax.random.split(key, 5)
    table = jax.random.normal(k_emb, (V, N_DIM), jnp.float32) * 0.1
    w1 = jax.random.normal(k_w1, (CONTEXT_SIZE * N_DIM, HIDDEN), jnp.float32) * 0.1
    b1 = jax.random.normal(k_b1, (1, HIDDEN), jnp.float32) * 0.1
    w2 = jax.random.normal(k_w2, (HIDDEN, V), jnp.float32) * 0.1
    b2 = jax.random.normal(k_b2, (1, V), jnp.float32) * 0.1

    # Vocab padding: zero weight columns / table rows, -1e30 bias in pad lanes
    # so padded logits never affect max / logsumexp.
    pad_v = VP - V
    table_p = jnp.pad(table, ((0, pad_v), (0, 0)))     # (VP, D)
    w2_p = jnp.pad(w2, ((0, 0), (0, pad_v)))           # (H, VP)
    b2_p = jnp.pad(b2, ((0, 0), (0, pad_v)), constant_values=-1e30)

    # One-time host-side fold: embedding + linear1 (+ bias) become per-context
    # (VP, H) lookup tables, concatenated along the contraction axis (K = C*VP).
    m_blocks = []
    for cpos in range(CONTEXT_SIZE):
        m_c = jnp.dot(table_p, w1[cpos * N_DIM:(cpos + 1) * N_DIM, :],
                      precision=jax.lax.Precision.HIGHEST)      # (VP, H)
        if cpos == 0:
            m_c = m_c + b1          # fold linear1 bias into the context-0 block
        m_blocks.append(m_c)
    m_cat = jnp.concatenate(m_blocks, axis=0)                    # (C*VP, H)

    out_full = ngram_forward(ids_pad, m_cat, w2_p, b2_p)
    jax.block_until_ready(out_full)
    log_prob = out_full[:B, :V]                        # slice away batch/vocab pad

    ref = reference_forward(ids, table, w1, b1, w2, b2)
    assert log_prob.shape == (B, V)
    assert jnp.allclose(log_prob, ref, atol=1e-4, rtol=1e-5)
    # log-probabilities of every context should sum (in prob space) to 1
    assert jnp.allclose(jnp.sum(jnp.exp(log_prob), axis=-1),
                        jnp.ones((B,), jnp.float32), atol=1e-4)
    # original-module call shape: one context -> (1, V)
    assert log_prob[0:1].shape == (1, V)

    print("KERNEL_OK")
</pallas_src>

<mosaic_0001>
module attributes {stable_mosaic.version = 11 : i64} {
  func.func @ngram_kernel(%arg0: i32, %arg1: memref<64x2xi32, #tpu.memory_space<vmem>>, %arg2: memref<256x128xf32, #tpu.memory_space<vmem>>, %arg3: memref<128x128xf32, #tpu.memory_space<vmem>>, %arg4: memref<1x128xf32, #tpu.memory_space<vmem>>, %arg5: memref<64x128xf32, #tpu.memory_space<vmem>>) attributes {dimension_semantics = [#tpu.dimension_semantics<parallel>], iteration_bounds = array<i64: 2>, scalar_prefetch = 0 : i64, scratch_operands = 0 : i64, tpu.core_type = #tpu.core_type<tc>, window_params = [{transform_indices = @transform_0, window_bounds = array<i64: 64, 2>}, {pipeline_mode = #tpu.pipeline_mode<synchronous>, transform_indices = @transform_1, window_bounds = array<i64: 256, 128>}, {pipeline_mode = #tpu.pipeline_mode<synchronous>, transform_indices = @transform_2, window_bounds = array<i64: 128, 128>}, {pipeline_mode = #tpu.pipeline_mode<synchronous>, transform_indices = @transform_3, window_bounds = array<i64: 1, 128>}, {transform_indices = @transform_4, window_bounds = array<i64: 64, 128>}]} {
    %0 = tpu.iota {dimensions = array<i32: 1>} : vector<64x256xi32>
    %c0 = arith.constant 0 : index
    %c0_0 = arith.constant 0 : index
    %1 = vector.load %arg1[%c0, %c0_0] : memref<64x2xi32, #tpu.memory_space<vmem>>, vector<64x1xi32>
    %2 = vector.broadcast %1 : vector<64x1xi32> to vector<64x256xi32>
    %3 = arith.cmpi eq, %0, %2 : vector<64x256xi32>
    %c0_1 = arith.constant 0 : index
    %c1 = arith.constant 1 : index
    %4 = vector.load %arg1[%c0_1, %c1] : memref<64x2xi32, #tpu.memory_space<vmem>>, vector<64x1xi32>
    %c128_i32 = arith.constant 128 : i32
    %5 = vector.broadcast %c128_i32 : i32 to vector<64x1xi32>
    %6 = arith.addi %4, %5 : vector<64x1xi32>
    %7 = vector.broadcast %6 : vector<64x1xi32> to vector<64x256xi32>
    %8 = arith.cmpi eq, %0, %7 : vector<64x256xi32>
    %9 = arith.ori %3, %8 : vector<64x256xi1>
    %10 = arith.extui %9 : vector<64x256xi1> to vector<64x256xi32>
    %11 = arith.sitofp %10 : vector<64x256xi32> to vector<64x256xf32>
    %c0_2 = arith.constant 0 : index
    %c0_3 = arith.constant 0 : index
    %12 = vector.load %arg2[%c0_2, %c0_3] : memref<256x128xf32, #tpu.memory_space<vmem>>, vector<256x128xf32>
    %cst = arith.constant dense<0.000000e+00> : vector<64x128xf32>
    %13 = tpu.matmul %11, %12, %cst {dimension_numbers = #tpu.dot_dimension_numbers<[1], [0], [0], [1], [0, 0, 1, 1], [], []>} : vector<64x256xf32>, vector<256x128xf32>, vector<64x128xf32> -> vector<64x128xf32>
    %cst_4 = arith.constant 0.000000e+00 : f32
    %14 = vector.broadcast %cst_4 : f32 to vector<64x128xf32>
    %15 = arith.maximumf %13, %14 : vector<64x128xf32>
    %c0_5 = arith.constant 0 : index
    %c0_6 = arith.constant 0 : index
    %16 = vector.load %arg3[%c0_5, %c0_6] : memref<128x128xf32, #tpu.memory_space<vmem>>, vector<128x128xf32>
    %cst_7 = arith.constant dense<0.000000e+00> : vector<64x128xf32>
    %17 = tpu.matmul %15, %16, %cst_7 {dimension_numbers = #tpu.dot_dimension_numbers<[1], [0], [0], [1], [0, 0, 1, 1], [], []>} : vector<64x128xf32>, vector<128x128xf32>, vector<64x128xf32> -> vector<64x128xf32>
    %c0_8 = arith.constant 0 : index
    %c0_9 = arith.constant 0 : index
    %18 = vector.load %arg4[%c0_8, %c0_9] : memref<1x128xf32, #tpu.memory_space<vmem>>, vector<1x128xf32>
    %19 = vector.broadcast %18 : vector<1x128xf32> to vector<64x128xf32>
    %20 = arith.addf %17, %19 : vector<64x128xf32>
    %cst_10 = arith.constant dense<0xFF800000> : vector<64xf32>
    %21 = vector.multi_reduction <maximumf>, %20, %cst_10 [1] : vector<64x128xf32> to vector<64xf32>
    %22 = vector.shape_cast %21 : vector<64xf32> to vector<64x1xf32>
    %23 = vector.broadcast %22 : vector<64x1xf32> to vector<64x128xf32>
    %24 = arith.subf %20, %23 : vector<64x128xf32>
    %25 = math.exp %24 : vector<64x128xf32>
    %cst_11 = arith.constant dense<0.000000e+00> : vector<64xf32>
    %26 = vector.multi_reduction <add>, %25, %cst_11 [1] : vector<64x128xf32> to vector<64xf32>
    %27 = vector.shape_cast %26 : vector<64xf32> to vector<64x1xf32>
    %28 = math.log %27 : vector<64x1xf32>
    %29 = vector.broadcast %28 : vector<64x1xf32> to vector<64x128xf32>
    %30 = arith.subf %24, %29 : vector<64x128xf32>
    %c0_12 = arith.constant 0 : index
    %c0_13 = arith.constant 0 : index
    %31 = vector.load %arg5[%c0_12, %c0_13] : memref<64x128xf32, #tpu.memory_space<vmem>>, vector<64x128xf32>
    tpu.vector_store %arg5[%c0_12, %c0_13], %30 {strides = array<i32>} : memref<64x128xf32, #tpu.memory_space<vmem>>, vector<64x128xf32>,
    return
  }
  func.func @transform_0(%arg0: i32) -> (i32, i32) {
    %c0_i32 = arith.constant 0 : i32
    %c0_i32_0 = arith.constant 0 : i32
    return %arg0, %c0_i32 : i32, i32
  }
  func.func @transform_1(%arg0: i32) -> (i32, i32) {
    %c0_i32 = arith.constant 0 : i32
    %c0_i32_0 = arith.constant 0 : i32
    %c0_i32_1 = arith.constant 0 : i32
    return %c0_i32, %c0_i32_0 : i32, i32
  }
  func.func @transform_2(%arg0: i32) -> (i32, i32) {
    %c0_i32 = arith.constant 0 : i32
    %c0_i32_0 = arith.constant 0 : i32
    %c0_i32_1 = arith.constant 0 : i32
    return %c0_i32, %c0_i32_0 : i32, i32
  }
  func.func @transform_3(%arg0: i32) -> (i32, i32) {
    %c0_i32 = arith.constant 0 : i32
    %c0_i32_0 = arith.constant 0 : i32
    %c0_i32_1 = arith.constant 0 : i32
    return %c0_i32, %c0_i32_0 : i32, i32
  }
  func.func @transform_4(%arg0: i32) -> (i32, i32) {
    %c0_i32 = arith.constant 0 : i32
    %c0_i32_0 = arith.constant 0 : i32
    return %arg0, %c0_i32 : i32, i32
  }
}

</mosaic_0001>

<llo_original>
// kernel: tpu_custom_call.1
$region0: #{tpu_custom_call.1}
  #allocation0 [shape = 'u32[]', space=smem, size = 0x4, offset = 0x4, fixed_abs, tag = 'smem constant byte address 0x4 - core index']
  #allocation1 [shape = 'u32[72,128]{1,0:T(1,128)}', space=vmem, size = 0x9000, scoped, tag = 'internal scratch']
  %s0 = inlined_call_operand.vmem [shape: s32[128,2], index: 0, kind: input, shape index: {}]
  %s1 = inlined_call_operand.hbm [shape: f32[256,128], index: 1, kind: input, shape index: {}]
  %s2 = inlined_call_operand.vmem [shape: f32[128,128], index: 2, kind: input, shape index: {}]
  %s3 = inlined_call_operand.vmem [shape: f32[1,128], index: 3, kind: input, shape index: {}]
  %s4 = inlined_call_operand.hbm [shape: f32[128,128], index: 4, kind: output, shape index: {}]
  %s5 = sld [smem:[#allocation0]]
  $region53: #{tpu_custom_call.1} parent=0
    _
  %s7 = ssub.s32 1, %s5
  %s8 = scalar_select 0, %s7, %s5
  $region1: #{tpu_custom_call.1} parent=0
    #allocation2 [shape = 'u8[131072]{0}', space=vmem, size = 0x20000, scoped, tag = 'input window, operand 1, single buffered']
    #allocation3 [shape = 's32[2]{0}', space=sflag, size = 0x8, scoped, tag = 'scoped memory for tpu_custom_call.1']
    #allocation4 [shape = 's32[2]{0}', space=sflag, size = 0x8, scoped, tag = 'scoped memory for tpu_custom_call.1']
    #allocation5 [shape = 'u8[65536]{0}', space=vmem, size = 0x10000, scoped, tag = 'output window, operand 0']
    %9 = vsyncpa [#allocation3], 0
    %10 = vsyncpa [#allocation4], 0
    %s11 = scalar_lea.sflag [#allocation4], 1
    %12 = vsyncpa %s11, 0
    loop: start=0, step=1, limit=4
    $region2: #{tpu_custom_call.1} parent=1 // loop_pre_header
      _
    $region3: #{tpu_custom_call.1} parent=1 // loop_header
      %s14 = sphi 0, %s18
      %p15 = scmp.ge.s32.totalorder %s14, 4
      %s24 = sphi 0, %s26
      %s27 = sphi 0, %s24
      %s28 = sphi 0, %s27
      %s44 = sphi 0, %s28
      %s48 = sphi 0, %s48
      %s50 = sphi 0, %s48
      %s51 = sphi 0, %s50
      %s65 = sphi 0, %s51
      %s69 = sphi 0, %s69
      %s71 = sphi 0, %s69
      %s72 = sphi 0, %s71
      %s86 = sphi 0, %s72
      %s90 = sphi 0, %s90
      %s92 = sphi 0, %s90
      %s93 = sphi 0, %s92
      %s107 = sphi 0, %s93
      %s113 = sphi 0, %s115
      %s116 = sphi 0, %s113
      %s117 = sphi 0, %s116
      %s133 = sphi 0, %s117
    $region4: #{tpu_custom_call.1} parent=1 // loop_header_branch
      %17 = sbr.rel (%p15) target = $region8
    $region5: #{tpu_custom_call.1} parent=1 // loop_body
      %s19 = ssub.s32 %s14, 1
      %s20 = ssub.s32 %s14, 2
      %s21 = sadd.s32 %s14, 1
      %s22 = ssub.s32 %s14, %s21
      %p23 = scmp.eq.s32.totalorder %s22, 0
      %s25 = sadd.s32 %s24, 1
      %s26 = scalar_select %p23, %s24, %s25
      %p29 = pneg %p23
      %p30 = scmp.eq.s32.totalorder %s14, 1
      %p31 = por %p29, %p30
      %p32 = scmp.ne.s32.totalorder %s24, %s27
      %p33 = scmp.eq.s32.totalorder %s14, 0
      %p34 = por %p32, %p33
      %p35 = scmp.ne.s32.totalorder %s24, %s27
      %p36 = scmp.eq.s32.totalorder %s19, 1
      %p37 = por %p35, %p36
      %p38 = scmp.ne.s32.totalorder %s27, %s28
      %p39 = scmp.eq.s32.totalorder %s19, 0
      %p40 = por %p38, %p39
      %p41 = scmp.ne.s32.totalorder %s27, %s28
      %p42 = scmp.eq.s32.totalorder %s20, 1
      %p43 = por %p41, %p42
      %p45 = scmp.ne.s32.totalorder %s28, %s44
      %p46 = scmp.eq.s32.totalorder %s20, 0
      %p47 = por %p45, %p46
      %s49 = sadd.s32 %s48, 1
      %p52 = scmp.eq.s32.totalorder %s14, 1
      %p53 = scmp.ne.s32.totalorder %s48, %s50
      %p54 = scmp.eq.s32.totalorder %s14, 0
      %p55 = por %p53, %p54
      %p56 = scmp.ne.s32.totalorder %s48, %s50
      %p57 = scmp.eq.s32.totalorder %s19, 1
      %p58 = por %p56, %p57
      %p59 = scmp.ne.s32.totalorder %s50, %s51
      %p60 = scmp.eq.s32.totalorder %s19, 0
      %p61 = por %p59, %p60
      %p62 = scmp.ne.s32.totalorder %s50, %s51
      %p63 = scmp.eq.s32.totalorder %s20, 1
      %p64 = por %p62, %p63
      %p66 = scmp.ne.s32.totalorder %s51, %s65
      %p67 = scmp.eq.s32.totalorder %s20, 0
      %p68 = por %p66, %p67
      %s70 = sadd.s32 %s69, 1
      %p73 = scmp.eq.s32.totalorder %s14, 1
      %p74 = scmp.ne.s32.totalorder %s69, %s71
      %p75 = scmp.eq.s32.totalorder %s14, 0
      %p76 = por %p74, %p75
      %p77 = scmp.ne.s32.totalorder %s69, %s71
      %p78 = scmp.eq.s32.totalorder %s19, 1
      %p79 = por %p77, %p78
      %p80 = scmp.ne.s32.totalorder %s71, %s72
      %p81 = scmp.eq.s32.totalorder %s19, 0
      %p82 = por %p80, %p81
      %p83 = scmp.ne.s32.totalorder %s71, %s72
      %p84 = scmp.eq.s32.totalorder %s20, 1
      %p85 = por %p83, %p84
      %p87 = scmp.ne.s32.totalorder %s72, %s86
      %p88 = scmp.eq.s32.totalorder %s20, 0
      %p89 = por %p87, %p88
      %s91 = sadd.s32 %s90, 1
      %p94 = scmp.eq.s32.totalorder %s14, 1
      %p95 = scmp.ne.s32.totalorder %s90, %s92
      %p96 = scmp.eq.s32.totalorder %s14, 0
      %p97 = por %p95, %p96
      %p98 = scmp.ne.s32.totalorder %s90, %s92
      %p99 = scmp.eq.s32.totalorder %s19, 1
      %p100 = por %p98, %p99
      %p101 = scmp.ne.s32.totalorder %s92, %s93
      %p102 = scmp.eq.s32.totalorder %s19, 0
      %p103 = por %p101, %p102
      %p104 = scmp.ne.s32.totalorder %s92, %s93
      %p105 = scmp.eq.s32.totalorder %s20, 1
      %p106 = por %p104, %p105
      %p108 = scmp.ne.s32.totalorder %s93, %s107
      %p109 = scmp.eq.s32.totalorder %s20, 0
      %p110 = por %p108, %p109
      %s111 = ssub.s32 %s14, %s21
      %p112 = scmp.eq.s32.totalorder %s111, 0
      %s114 = sadd.s32 %s113, 1
      %s115 = scalar_select %p112, %s113, %s114
      %p118 = pneg %p112
      %p119 = scmp.eq.s32.totalorder %s14, 1
      %p120 = por %p118, %p119
      %p121 = scmp.ne.s32.totalorder %s113, %s116
      %p122 = scmp.eq.s32.totalorder %s14, 0
      %p123 = por %p121, %p122
      %p124 = scmp.ne.s32.totalorder %s113, %s116
      %p125 = scmp.eq.s32.totalorder %s19, 1
      %p126 = por %p124, %p125
      %p127 = scmp.ne.s32.totalorder %s116, %s117
      %p128 = scmp.eq.s32.totalorder %s19, 0
      %p129 = por %p127, %p128
      %p130 = scmp.ne.s32.totalorder %s116, %s117
      %p131 = scmp.eq.s32.totalorder %s20, 1
      %p132 = por %p130, %p131
      %p134 = scmp.ne.s32.totalorder %s117, %s133
      %p135 = scmp.eq.s32.totalorder %s20, 0
      %p136 = por %p134, %p135
      %p137 = scmp.le.s32.totalorder 1, %s14
      %p138 = scmp.lt.s32.totalorder %s14, 3
      %p139 = pnand %p137, %p138
      %p140 = pneg %p139
      // Predicated region
      $region9: #{tpu_custom_call.1} parent=5 // pred_check
        _
      $region10: #{tpu_custom_call.1} parent=5 // pred_check_branch
        %142 = sbr.rel (%p139) target = $region12
      $region11: #{tpu_custom_call.1} parent=5 // pred_region
        %s143 = ssub.s32 %s14, 1
        // Predicated region
        $region13: #{tpu_custom_call.1} parent=11 // pred_check
          %p144 = pneg %p61
        $region14: #{tpu_custom_call.1} parent=11 // pred_check_branch
          %146 = sbr.rel (%p144) target = $region16
        $region15: #{tpu_custom_call.1} parent=11 // pred_region
          %148 = vsyncadd [#allocation3], 0
          %s149 = sshll.u32 %s1, 4
          %s150 = int_to_ptr.hbm [resolvable:$true] %s149
          %s151 = sshll.u32 [#allocation2], 4
          %s152 = int_to_ptr.vmem [resolvable:$true] %s151
          %157 = dma.hbm_to_vmem [thread:$0]  %s150, 4096, %s152, [#allocation3], 128, 128, 8
        $region16: #{tpu_custom_call.1} parent=11 // pred_fallthru
          _
        // Predicated region
        $region17: #{tpu_custom_call.1} parent=11 // pred_check
          %p158 = pneg %p82
        $region18: #{tpu_custom_call.1} parent=11 // pred_check_branch
          %160 = sbr.rel (%p158) target = $region20
        $region19: #{tpu_custom_call.1} parent=11 // pred_region
          _
        $region20: #{tpu_custom_call.1} parent=11 // pred_fallthru
          _
        // Predicated region
        $region21: #{tpu_custom_call.1} parent=11 // pred_check
          %p161 = pneg %p103
        $region22: #{tpu_custom_call.1} parent=11 // pred_check_branch
          %163 = sbr.rel (%p161) target = $region24
        $region23: #{tpu_custom_call.1} parent=11 // pred_region
          _
        $region24: #{tpu_custom_call.1} parent=11 // pred_fallthru
          _
      $region12: #{tpu_custom_call.1} parent=5 // pred_fallthru
        _
      %p164 = scmp.lt.s32.totalorder %s14, 2
      // Predicated region
      $region25: #{tpu_custom_call.1} parent=5 // pred_check
        %p165 = pneg %p164
      $region26: #{tpu_custom_call.1} parent=5 // pred_check_branch
        %167 = sbr.rel (%p165) target = $region28
      $region27: #{tpu_custom_call.1} parent=5 // pred_region
        // Predicated region
        $region29: #{tpu_custom_call.1} parent=27 // pred_check
          %p168 = pneg %p34
        $region30: #{tpu_custom_call.1} parent=27 // pred_check_branch
          %170 = sbr.rel (%p168) target = $region32
        $region31: #{tpu_custom_call.1} parent=27 // pred_region
          %s171 = smul.u32 8, %s14
          %p172 = scmp.lt.s32.totalorder %s171, 15
          %s173 = scalar_select %p172, %s171, 15
          %s174 = smul.addr %s173, 8
          %s175 = scalar_lea.vmem %s0, %s174
          %s176 = smul.u32 8, %s14
        $region32: #{tpu_custom_call.1} parent=27 // pred_fallthru
          _
      $region28: #{tpu_custom_call.1} parent=5 // pred_fallthru
        _
      %p177 = scmp.le.s32.totalorder 1, %s14
      %p178 = scmp.lt.s32.totalorder %s14, 3
      %p179 = pnand %p177, %p178
      %p180 = pneg %p179
      // Predicated region
      $region33: #{tpu_custom_call.1} parent=5 // pred_check
        _
      $region34: #{tpu_custom_call.1} parent=5 // pred_check_branch
        %182 = sbr.rel (%p179) target = $region36
      $region35: #{tpu_custom_call.1} parent=5 // pred_region
        %s183 = ssub.s32 %s14, 1
        // Predicated region
        $region37: #{tpu_custom_call.1} parent=35 // pred_check
          %p184 = pneg %p61
        $region38: #{tpu_custom_call.1} parent=35 // pred_check_branch
          %186 = sbr.rel (%p184) target = $region40
        $region39: #{tpu_custom_call.1} parent=35 // pred_region
          %188 = dma.done [#allocation3], 4096
        $region40: #{tpu_custom_call.1} parent=35 // pred_fallthru
          _
        %s189 = smul.u32 8, %s19
        %p190 = scmp.lt.s32.totalorder %s189, 15
        %s191 = scalar_select %p190, %s189, 15
        %s192 = smul.addr %s191, 8
        %s193 = scalar_lea.vmem %s0, %s192
        %p194 = pneg %p40
        %p195 = pneg %p37
        %p196 = pneg %p61
        %p197 = pneg %p58
        %p198 = pneg %p82
        %p199 = pneg %p79
        %p200 = pneg %p103
        %p201 = pneg %p100
        %p202 = pneg %p129
        %p203 = pneg %p126
        %s204 = sand.u32 %s116, 1
        %s205 = scalar_lea.sflag [#allocation4], %s204
        %s206 = sand.u32 %s116, 1
        %s207 = smul.addr %s206, 64
        %s208 = scalar_lea.vmem [#allocation5], %s207
        %s209 = smul.u32 8, %s19
        %p210 = scmp.lt.s32.totalorder %s209, 15
        %s211 = scalar_select %p210, %s209, 15
        %s212 = smul.addr %s211, 8
        %s213 = scalar_lea.vmem %s0, %s212
        %s214 = smul.u32 8, %s19
        %s215 = smul.u32 8, %s19
        %v216 = vlaneseq
        %v217 = vand.u32 %v216, 127
        %v218 = vadd.s32 %v217, 128
        %v219 = vld [vmem:[%s213] sm:$0xff]
        %v220 = vld [vmem:[%s213 + $0x8] sm:$0xff]
        %v221 = vld [vmem:[%s213 + $0x10] sm:$0xff]
        %v222 = vld [vmem:[%s213 + $0x18] sm:$0xff]
        %v223 = vld [vmem:[%s213 + $0x20] sm:$0xff]
        %v224 = vld [vmem:[%s213 + $0x28] sm:$0xff]
        %v225 = vld [vmem:[%s213 + $0x30] sm:$0xff]
        %v226 = vld [vmem:[%s213 + $0x38] sm:$0xff]
        %227 = vset.pattern.permute.xlu0 0
        %228 = vperm.xlu0 %227, %v219
        %v229 = vpop.permute.xlu0 %228
        %230 = vset.pattern.permute.xlu0 0
        %231 = vperm.xlu0 %230, %v220
        %v232 = vpop.permute.xlu0 %231
        %233 = vset.pattern.permute.xlu0 0
        %234 = vperm.xlu0 %233, %v221
        %v235 = vpop.permute.xlu0 %234
        %236 = vset.pattern.permute.xlu0 0
        %237 = vperm.xlu0 %236, %v222
        %v238 = vpop.permute.xlu0 %237
        %239 = vset.pattern.permute.xlu0 0
        %240 = vperm.xlu0 %239, %v223
        %v241 = vpop.permute.xlu0 %240
        %242 = vset.pattern.permute.xlu0 0
        %243 = vperm.xlu0 %242, %v224
        %v244 = vpop.permute.xlu0 %243
        %245 = vset.pattern.permute.xlu0 0
        %246 = vperm.xlu0 %245, %v225
        %v247 = vpop.permute.xlu0 %246
        %248 = vset.pattern.permute.xlu0 0
        %249 = vperm.xlu0 %248, %v226
        %v250 = vpop.permute.xlu0 %249
        %vm251 = vcmp.eq.s32.totalorder %v217, %v229
        %vm252 = vcmp.eq.s32.totalorder %v218, %v229
        %vm253 = vcmp.eq.s32.totalorder %v217, %v232
        %vm254 = vcmp.eq.s32.totalorder %v218, %v232
        %vm255 = vcmp.eq.s32.totalorder %v217, %v235
        %vm256 = vcmp.eq.s32.totalorder %v218, %v235
        %vm257 = vcmp.eq.s32.totalorder %v217, %v238
        %vm258 = vcmp.eq.s32.totalorder %v218, %v238
        %vm259 = vcmp.eq.s32.totalorder %v217, %v241
        %vm260 = vcmp.eq.s32.totalorder %v218, %v241
        %vm261 = vcmp.eq.s32.totalorder %v217, %v244
        %vm262 = vcmp.eq.s32.totalorder %v218, %v244
        %vm263 = vcmp.eq.s32.totalorder %v217, %v247
        %vm264 = vcmp.eq.s32.totalorder %v218, %v247
        %vm265 = vcmp.eq.s32.totalorder %v217, %v250
        %vm266 = vcmp.eq.s32.totalorder %v218, %v250
        %v267 = vadd.s32 %v219, 128
        %v268 = vadd.s32 %v220, 128
        %v269 = vadd.s32 %v221, 128
        %v270 = vadd.s32 %v222, 128
        %v271 = vadd.s32 %v223, 128
        %v272 = vadd.s32 %v224, 128
        %v273 = vadd.s32 %v225, 128
        %v274 = vadd.s32 %v226, 128
        %275 = vset.pattern.permute.xlu0 1
        %276 = vperm.xlu0 %275, %v267
        %v277 = vpop.permute.xlu0 %276
        %278 = vset.pattern.permute.xlu0 1
        %279 = vperm.xlu0 %278, %v268
        %v280 = vpop.permute.xlu0 %279
        %281 = vset.pattern.permute.xlu0 1
        %282 = vperm.xlu0 %281, %v269
        %v283 = vpop.permute.xlu0 %282
        %284 = vset.pattern.permute.xlu0 1
        %285 = vperm.xlu0 %284, %v270
        %v286 = vpop.permute.xlu0 %285
        %287 = vset.pattern.permute.xlu0 1
        %288 = vperm.xlu0 %287, %v271
        %v289 = vpop.permute.xlu0 %288
        %290 = vset.pattern.permute.xlu0 1
        %291 = vperm.xlu0 %290, %v272
        %v292 = vpop.permute.xlu0 %291
        %293 = vset.pattern.permute.xlu0 1
        %294 = vperm.xlu0 %293, %v273
        %v295 = vpop.permute.xlu0 %294
        %296 = vset.pattern.permute.xlu0 1
        %297 = vperm.xlu0 %296, %v274
        %v298 = vpop.permute.xlu0 %297
        %vm299 = vcmp.eq.s32.totalorder %v217, %v277
        %vm300 = vcmp.eq.s32.totalorder %v218, %v277
        %vm301 = vcmp.eq.s32.totalorder %v217, %v280
        %vm302 = vcmp.eq.s32.totalorder %v218, %v280
        %vm303 = vcmp.eq.s32.totalorder %v217, %v283
        %vm304 = vcmp.eq.s32.totalorder %v218, %v283
        %vm305 = vcmp.eq.s32.totalorder %v217, %v286
        %vm306 = vcmp.eq.s32.totalorder %v218, %v286
        %vm307 = vcmp.eq.s32.totalorder %v217, %v289
        %vm308 = vcmp.eq.s32.totalorder %v218, %v289
        %vm309 = vcmp.eq.s32.totalorder %v217, %v292
        %vm310 = vcmp.eq.s32.totalorder %v218, %v292
        %vm311 = vcmp.eq.s32.totalorder %v217, %v295
        %vm312 = vcmp.eq.s32.totalorder %v218, %v295
        %vm313 = vcmp.eq.s32.totalorder %v217, %v298
        %vm314 = vcmp.eq.s32.totalorder %v218, %v298
        %vm315 = vmor %vm251, %vm299
        %vm316 = vmor %vm252, %vm300
        %vm317 = vmor %vm253, %vm301
        %vm318 = vmor %vm254, %vm302
        %vm319 = vmor %vm255, %vm303
        %vm320 = vmor %vm256, %vm304
        %vm321 = vmor %vm257, %vm305
        %vm322 = vmor %vm258, %vm306
        %vm323 = vmor %vm259, %vm307
        %vm324 = vmor %vm260, %vm308
        %vm325 = vmor %vm261, %vm309
        %vm326 = vmor %vm262, %vm310
        %vm327 = vmor %vm263, %vm311
        %vm328 = vmor %vm264, %vm312
        %vm329 = vmor %vm265, %vm313
        %vm330 = vmor %vm266, %vm314
        %v331 = vsel %vm315, 1, 0
        %v332 = vsel %vm316, 1, 0
        %v333 = vsel %vm317, 1, 0
        %v334 = vsel %vm318, 1, 0
        %v335 = vsel %vm319, 1, 0
        %v336 = vsel %vm320, 1, 0
        %v337 = vsel %vm321, 1, 0
        %v338 = vsel %vm322, 1, 0
        %v339 = vsel %vm323, 1, 0
        %v340 = vsel %vm324, 1, 0
        %v341 = vsel %vm325, 1, 0
        %v342 = vsel %vm326, 1, 0
        %v343 = vsel %vm327, 1, 0
        %v344 = vsel %vm328, 1, 0
        %v345 = vsel %vm329, 1, 0
        %v346 = vsel %vm330, 1, 0
        %v347 = vcvt.s32.f32 %v331
        %v348 = vcvt.s32.f32 %v332
        %v349 = vcvt.s32.f32 %v333
        %v350 = vcvt.s32.f32 %v334
        %v351 = vcvt.s32.f32 %v335
        %v352 = vcvt.s32.f32 %v336
        %v353 = vcvt.s32.f32 %v337
        %v354 = vcvt.s32.f32 %v338
        %v355 = vcvt.s32.f32 %v339
        %v356 = vcvt.s32.f32 %v340
        %v357 = vcvt.s32.f32 %v341
        %v358 = vcvt.s32.f32 %v342
        %v359 = vcvt.s32.f32 %v343
        %v360 = vcvt.s32.f32 %v344
        %v361 = vcvt.s32.f32 %v345
        %v362 = vcvt.s32.f32 %v346
        %v363 = vld [vmem:[#allocation2] sm:$0xff]
        %v364 = vld [vmem:[#allocation2 + $0x8] sm:$0xff]
        %v365 = vld [vmem:[#allocation2 + $0x10] sm:$0xff]
        %v366 = vld [vmem:[#allocation2 + $0x18] sm:$0xff]
        %v367 = vld [vmem:[#allocation2 + $0x20] sm:$0xff]
        %v368 = vld [vmem:[#allocation2 + $0x28] sm:$0xff]
        %v369 = vld [vmem:[#allocation2 + $0x30] sm:$0xff]
        %v370 = vld [vmem:[#allocation2 + $0x38] sm:$0xff]
        %v371 = vld [vmem:[#allocation2 + $0x40] sm:$0xff]
        %v372 = vld [vmem:[#allocation2 + $0x48] sm:$0xff]
        %v373 = vld [vmem:[#allocation2 + $0x50] sm:$0xff]
        %v374 = vld [vmem:[#allocation2 + $0x58] sm:$0xff]
        %v375 = vld [vmem:[#allocation2 + $0x60] sm:$0xff]
        %v376 = vld [vmem:[#allocation2 + $0x68] sm:$0xff]
        %v377 = vld [vmem:[#allocation2 + $0x70] sm:$0xff]
        %v378 = vld [vmem:[#allocation2 + $0x78] sm:$0xff]
        %v379 = vld [vmem:[#allocation2 + $0x80] sm:$0xff]
        %v380 = vld [vmem:[#allocation2 + $0x88] sm:$0xff]
        %v381 = vld [vmem:[#allocation2 + $0x90] sm:$0xff]
        %v382 = vld [vmem:[#allocation2 + $0x98] sm:$0xff]
        %v383 = vld [vmem:[#allocation2 + $0xa0] sm:$0xff]
        %v384 = vld [vmem:[#allocation2 + $0xa8] sm:$0xff]
        %v385 = vld [vmem:[#allocation2 + $0xb0] sm:$0xff]
        %v386 = vld [vmem:[#allocation2 + $0xb8] sm:$0xff]
        %v387 = vld [vmem:[#allocation2 + $0xc0] sm:$0xff]
        %v388 = vld [vmem:[#allocation2 + $0xc8] sm:$0xff]
        %v389 = vld [vmem:[#allocation2 + $0xd0] sm:$0xff]
        %v390 = vld [vmem:[#allocation2 + $0xd8] sm:$0xff]
        %v391 = vld [vmem:[#allocation2 + $0xe0] sm:$0xff]
        %v392 = vld [vmem:[#allocation2 + $0xe8] sm:$0xff]
        %v393 = vld [vmem:[#allocation2 + $0xf0] sm:$0xff]
        %v394 = vld [vmem:[#allocation2 + $0xf8] sm:$0xff]
        %395 = vmatpush.msra.mxu0 %v378
        %396 = vmatpush.msra.mxu0 %v377
        %397 = vmatpush.msra.mxu0 %v376
        %398 = vmatpush.msra.mxu0 %v375
        %399 = vmatpush.msra.mxu0 %v374
        %400 = vmatpush.msra.mxu0 %v373
        %401 = vmatpush.msra.mxu0 %v372
        %402 = vmatpush.msra.mxu0 %v371
        %403 = vmatpush.msra.mxu0 %v370
        %404 = vmatpush.msra.mxu0 %v369
        %405 = vmatpush.msra.mxu0 %v368
        %406 = vmatpush.msra.mxu0 %v367
        %407 = vmatpush.msra.mxu0 %v366
        %408 = vmatpush.msra.mxu0 %v365
        %409 = vmatpush.msra.mxu0 %v364
        %410 = vmatpush.msra.mxu0 %v363
        %411 = vmatmul.f32.gmra.mxu0 %v347
        %v412 = vpop.f32.mrf.mxu0
        %v413 = vadd.f32 0.0, %v412
        %414 = vmatmul.f32.gmra.mxu0 %v349
        %v415 = vpop.f32.mrf.mxu0
        %v416 = vadd.f32 0.0, %v415
        %417 = vmatmul.f32.gmra.mxu0 %v351
        %v418 = vpop.f32.mrf.mxu0
        %v419 = vadd.f32 0.0, %v418
        %420 = vmatmul.f32.gmra.mxu0 %v353
        %v421 = vpop.f32.mrf.mxu0
        %v422 = vadd.f32 0.0, %v421
        %423 = vmatmul.f32.gmra.mxu0 %v355
        %v424 = vpop.f32.mrf.mxu0
        %v425 = vadd.f32 0.0, %v424
        %426 = vmatmul.f32.gmra.mxu0 %v357
        %v427 = vpop.f32.mrf.mxu0
        %v428 = vadd.f32 0.0, %v427
        %429 = vmatmul.f32.gmra.mxu0 %v359
        %v430 = vpop.f32.mrf.mxu0
        %v431 = vadd.f32 0.0, %v430
        %432 = vmatmul.f32.gmra.mxu0 %v361
        %v433 = vpop.f32.mrf.mxu0
        %v434 = vadd.f32 0.0, %v433
        %435 = vdwg.mxu0
        %436 = vmatpush.msra.mxu0 %v394
        %437 = vmatpush.msra.mxu0 %v393
        %438 = vmatpush.msra.mxu0 %v392
        %439 = vmatpush.msra.mxu0 %v391
        %440 = vmatpush.msra.mxu0 %v390
        %441 = vmatpush.msra.mxu0 %v389
        %442 = vmatpush.msra.mxu0 %v388
        %443 = vmatpush.msra.mxu0 %v387
        %444 = vmatpush.msra.mxu0 %v386
        %445 = vmatpush.msra.mxu0 %v385
        %446 = vmatpush.msra.mxu0 %v384
        %447 = vmatpush.msra.mxu0 %v383
        %448 = vmatpush.msra.mxu0 %v382
        %449 = vmatpush.msra.mxu0 %v381
        %450 = vmatpush.msra.mxu0 %v380
        %451 = vmatpush.msra.mxu0 %v379
        %452 = vmatmul.f32.gmra.mxu0 %v348
        %v453 = vpop.f32.mrf.mxu0
        %v454 = vadd.f32 %v413, %v453
        %455 = vmatmul.f32.gmra.mxu0 %v350
        %v456 = vpop.f32.mrf.mxu0
        %v457 = vadd.f32 %v416, %v456
        %458 = vmatmul.f32.gmra.mxu0 %v352
        %v459 = vpop.f32.mrf.mxu0
        %v460 = vadd.f32 %v419, %v459
        %461 = vmatmul.f32.gmra.mxu0 %v354
        %v462 = vpop.f32.mrf.mxu0
        %v463 = vadd.f32 %v422, %v462
        %464 = vmatmul.f32.gmra.mxu0 %v356
        %v465 = vpop.f32.mrf.mxu0
        %v466 = vadd.f32 %v425, %v465
        %467 = vmatmul.f32.gmra.mxu0 %v358
        %v468 = vpop.f32.mrf.mxu0
        %v469 = vadd.f32 %v428, %v468
        %470 = vmatmul.f32.gmra.mxu0 %v360
        %v471 = vpop.f32.mrf.mxu0
        %v472 = vadd.f32 %v431, %v471
        %473 = vmatmul.f32.gmra.mxu0 %v362
        %v474 = vpop.f32.mrf.mxu0
        %v475 = vadd.f32 %v434, %v474
        %476 = vdwg.mxu0
        %v477 = vmax.f32 %v454, 0.0
        %v478 = vmax.f32 %v457, 0.0
        %v479 = vmax.f32 %v460, 0.0
        %v480 = vmax.f32 %v463, 0.0
        %v481 = vmax.f32 %v466, 0.0
        %v482 = vmax.f32 %v469, 0.0
        %v483 = vmax.f32 %v472, 0.0
        %v484 = vmax.f32 %v475, 0.0
        %v485 = vld [vmem:[%s2] sm:$0xff]
        %v486 = vld [vmem:[%s2 + $0x8] sm:$0xff]
        %v487 = vld [vmem:[%s2 + $0x10] sm:$0xff]
        %v488 = vld [vmem:[%s2 + $0x18] sm:$0xff]
        %v489 = vld [vmem:[%s2 + $0x20] sm:$0xff]
        %v490 = vld [vmem:[%s2 + $0x28] sm:$0xff]
        %v491 = vld [vmem:[%s2 + $0x30] sm:$0xff]
        %v492 = vld [vmem:[%s2 + $0x38] sm:$0xff]
        %v493 = vld [vmem:[%s2 + $0x40] sm:$0xff]
        %v494 = vld [vmem:[%s2 + $0x48] sm:$0xff]
        %v495 = vld [vmem:[%s2 + $0x50] sm:$0xff]
        %v496 = vld [vmem:[%s2 + $0x58] sm:$0xff]
        %v497 = vld [vmem:[%s2 + $0x60] sm:$0xff]
        %v498 = vld [vmem:[%s2 + $0x68] sm:$0xff]
        %v499 = vld [vmem:[%s2 + $0x70] sm:$0xff]
        %v500 = vld [vmem:[%s2 + $0x78] sm:$0xff]
        %v501 = vld [vmem:[%s3] sm:$0x1]
        %v503 = vperm.slane %v501, 0
        %505 = vmatpush.msra.mxu0 %v500
        %506 = vmatpush.msra.mxu0 %v499
        %507 = vmatpush.msra.mxu0 %v498
        %508 = vmatpush.msra.mxu0 %v497
        %509 = vmatpush.msra.mxu0 %v496
        %510 = vmatpush.msra.mxu0 %v495
        %511 = vmatpush.msra.mxu0 %v494
        %512 = vmatpush.msra.mxu0 %v493
        %513 = vmatpush.msra.mxu0 %v492
        %514 = vmatpush.msra.mxu0 %v491
        %515 = vmatpush.msra.mxu0 %v490
        %516 = vmatpush.msra.mxu0 %v489
        %517 = vmatpush.msra.mxu0 %v488
        %518 = vmatpush.msra.mxu0 %v487
        %519 = vmatpush.msra.mxu0 %v486
        %520 = vmatpush.msra.mxu0 %v485
        %521 = vmatmul.f32.gmra.mxu0 %v477
        %v522 = vpop.f32.mrf.mxu0
        %v523 = vadd.f32 %v503, %v522
        %524 = vmatmul.f32.gmra.mxu0 %v478
        %v525 = vpop.f32.mrf.mxu0
        %v526 = vadd.f32 %v503, %v525
        %527 = vmatmul.f32.gmra.mxu0 %v479
        %v528 = vpop.f32.mrf.mxu0
        %v529 = vadd.f32 %v503, %v528
        %530 = vmatmul.f32.gmra.mxu0 %v480
        %v531 = vpop.f32.mrf.mxu0
        %v532 = vadd.f32 %v503, %v531
        %533 = vmatmul.f32.gmra.mxu0 %v481
        %v534 = vpop.f32.mrf.mxu0
        %v535 = vadd.f32 %v503, %v534
        %536 = vmatmul.f32.gmra.mxu0 %v482
        %v537 = vpop.f32.mrf.mxu0
        %v538 = vadd.f32 %v503, %v537
        %539 = vmatmul.f32.gmra.mxu0 %v483
        %v540 = vpop.f32.mrf.mxu0
        %v541 = vadd.f32 %v503, %v540
        %542 = vmatmul.f32.gmra.mxu0 %v484
        %v543 = vpop.f32.mrf.mxu0
        %v544 = vadd.f32 %v503, %v543
        %545 = vdwg.mxu0
        %546 = vmax.xlane.f32.xlu0 %v523
        %v547 = vpop.xlane.xlu0 %546
        %548 = vmax.xlane.f32.xlu0 %v526
        %v549 = vpop.xlane.xlu0 %548
        %550 = vmax.xlane.f32.xlu0 %v529
        %v551 = vpop.xlane.xlu0 %550
        %552 = vmax.xlane.f32.xlu0 %v532
        %v553 = vpop.xlane.xlu0 %552
        %554 = vmax.xlane.f32.xlu0 %v535
        %v555 = vpop.xlane.xlu0 %554
        %556 = vmax.xlane.f32.xlu0 %v538
        %v557 = vpop.xlane.xlu0 %556
        %558 = vmax.xlane.f32.xlu0 %v541
        %v559 = vpop.xlane.xlu0 %558
        %560 = vmax.xlane.f32.xlu0 %v544
        %v561 = vpop.xlane.xlu0 %560
        %v562 = vsub.f32 %v523, %v547
        %v563 = vsub.f32 %v526, %v549
        %v564 = vsub.f32 %v529, %v551
        %v565 = vsub.f32 %v532, %v553
        %v566 = vsub.f32 %v535, %v555
        %v567 = vsub.f32 %v538, %v557
        %v568 = vsub.f32 %v541, %v559
        %v569 = vsub.f32 %v544, %v561
        %v570 = vmul.f32 %v562, 1.442695
        %v571 = vpow.pop %v570
        %v572 = vmul.f32 %v563, 1.442695
        %v573 = vpow.pop %v572
        %v574 = vmul.f32 %v564, 1.442695
        %v575 = vpow.pop %v574
        %v576 = vmul.f32 %v565, 1.442695
        %v577 = vpow.pop %v576
        %v578 = vmul.f32 %v566, 1.442695
        %v579 = vpow.pop %v578
        %v580 = vmul.f32 %v567, 1.442695
        %v581 = vpow.pop %v580
        %v582 = vmul.f32 %v568, 1.442695
        %v583 = vpow.pop %v582
        %v584 = vmul.f32 %v569, 1.442695
        %v585 = vpow.pop %v584
        %586 = vadd.xlane.f32.xlu0 %v571
        %v587 = vpop.xlane.xlu0 %586
        %588 = vadd.xlane.f32.xlu0 %v573
        %v589 = vpop.xlane.xlu0 %588
        %590 = vadd.xlane.f32.xlu0 %v575
        %v591 = vpop.xlane.xlu0 %590
        %592 = vadd.xlane.f32.xlu0 %v577
        %v593 = vpop.xlane.xlu0 %592
        %594 = vadd.xlane.f32.xlu0 %v579
        %v595 = vpop.xlane.xlu0 %594
        %596 = vadd.xlane.f32.xlu0 %v581
        %v597 = vpop.xlane.xlu0 %596
        %598 = vadd.xlane.f32.xlu0 %v583
        %v599 = vpop.xlane.xlu0 %598
        %600 = vadd.xlane.f32.xlu0 %v585
        %v601 = vpop.xlane.xlu0 %600
        %v602 = vlog2.pop %v587
        %v603 = vmul.f32 %v602, 0.6931472
        %v604 = vlog2.pop %v589
        %v605 = vmul.f32 %v604, 0.6931472
        %v606 = vlog2.pop %v591
        %v607 = vmul.f32 %v606, 0.6931472
        %v608 = vlog2.pop %v593
        %v609 = vmul.f32 %v608, 0.6931472
        %v610 = vlog2.pop %v595
        %v611 = vmul.f32 %v610, 0.6931472
        %v612 = vlog2.pop %v597
        %v613 = vmul.f32 %v612, 0.6931472
        %v614 = vlog2.pop %v599
        %v615 = vmul.f32 %v614, 0.6931472
        %v616 = vlog2.pop %v601
        %v617 = vmul.f32 %v616, 0.6931472
        %v618 = vsub.f32 %v562, %v603
        %v619 = vsub.f32 %v563, %v605
        %v620 = vsub.f32 %v564, %v607
        %v621 = vsub.f32 %v565, %v609
        %v622 = vsub.f32 %v566, %v611
        %v623 = vsub.f32 %v567, %v613
        %v624 = vsub.f32 %v568, %v615
        %v625 = vsub.f32 %v569, %v617
        %626 = vst [vmem:[%s208] sm:$0xff] %v618
        %627 = vst [vmem:[%s208 + $0x8] sm:$0xff] %v619
        %628 = vst [vmem:[%s208 + $0x10] sm:$0xff] %v620
        %629 = vst [vmem:[%s208 + $0x18] sm:$0xff] %v621
        %630 = vst [vmem:[%s208 + $0x20] sm:$0xff] %v622
        %631 = vst [vmem:[%s208 + $0x28] sm:$0xff] %v623
        %632 = vst [vmem:[%s208 + $0x30] sm:$0xff] %v624
        %633 = vst [vmem:[%s208 + $0x38] sm:$0xff] %v625
        %s634 = sand.u32 %s116, 1
        %s635 = scalar_lea.sflag [#allocation4], %s634
        %s636 = sand.u32 %s116, 1
        %s637 = smul.addr %s636, 64
        %s638 = scalar_lea.vmem [#allocation5], %s637
        // Predicated region
        $region41: #{tpu_custom_call.1} parent=35 // pred_check
          %p639 = pneg %p126
        $region42: #{tpu_custom_call.1} parent=35 // pred_check_branch
          %641 = sbr.rel (%p639) target = $region44
        $region43: #{tpu_custom_call.1} parent=35 // pred_region
          %s642 = smul.u32 8, %s19
          %644 = vsyncadd %s635, 0
          %s645 = smul.addr %s642, 8
          %s646 = scalar_lea.hbm %s4, %s645
          %s647 = sshll.u32 %s638, 4
          %s648 = int_to_ptr.vmem [resolvable:$true] %s647
          %s649 = sshll.u32 %s646, 4
          %s650 = int_to_ptr.hbm [resolvable:$true] %s649
          %655 = dma.vmem_to_hbm [thread:$0]  %s648, 1024, %s650, %s635, 128, 128, 8
        $region44: #{tpu_custom_call.1} parent=35 // pred_fallthru
          _
      $region36: #{tpu_custom_call.1} parent=5 // pred_fallthru
        _
      %p656 = scmp.le.s32.totalorder 2, %s14
      // Predicated region
      $region45: #{tpu_custom_call.1} parent=5 // pred_check
        %p657 = pneg %p656
      $region46: #{tpu_custom_call.1} parent=5 // pred_check_branch
        %659 = sbr.rel (%p657) target = $region48
      $region47: #{tpu_custom_call.1} parent=5 // pred_region
        %s660 = ssub.s32 %s14, 2
        // Predicated region
        $region49: #{tpu_custom_call.1} parent=47 // pred_check
          %p661 = pneg %p132
        $region50: #{tpu_custom_call.1} parent=47 // pred_check_branch
          %663 = sbr.rel (%p661) target = $region52
        $region51: #{tpu_custom_call.1} parent=47 // pred_region
          %s664 = sand.u32 %s117, 1
          %s665 = scalar_lea.sflag [#allocation4], %s664
          %s666 = sand.u32 %s117, 1
          %s667 = smul.addr %s666, 64
          %s668 = scalar_lea.vmem [#allocation5], %s667
          %670 = dma.done %s665, 1024
        $region52: #{tpu_custom_call.1} parent=47 // pred_fallthru
          _
      $region48: #{tpu_custom_call.1} parent=5 // pred_fallthru
        _
    $region6: #{tpu_custom_call.1} parent=1 // loop_footer
      %s18 = sadd.s32 1, %s14
    $region7: #{tpu_custom_call.1} parent=1 // loop_footer_branch
      %13 = sbr.rel target = $region3
    $region8: #{tpu_custom_call.1} parent=1 // loop_exit
      _
    %671 = vsyncpa [#allocation3], 1
    %s672 = scalar_lea.sflag [#allocation3], 1
    %673 = vsyncpa %s672, 1
    %674 = vsyncpa [#allocation4], 1
    %s675 = scalar_lea.sflag [#allocation4], 1
    %676 = vsyncpa %s675, 1

</llo_original>
